<compile_context>
chip_gen: v5e
topology: v5e:2x2
jax: 0.10.0
libtpu: 0.0.40
codegen_flags: <defaults>
</compile_context>

<pallas_src>
import jax
import jax.numpy as jnp
from jax.experimental import pallas as pl
from jax.experimental.pallas import tpu as pltpu


def _baseline_head_kernel(x_ref, bn_scale_ref, bn_shift_ref, w_ref, b_ref,
                          feat_ref, mscore_ref):
    # x_ref: [TB, HW, C] bf16 (NHWC; channels lane-dense, spatial on sublanes)
    x = x_ref[...].astype(jnp.float32)

    # AdaptiveAvgPool2d(1) + view(B, -1): the 1/HW divisor is folded into
    # bn_scale, so a plain spatial sum (cheap sublane reduction) suffices.
    gsum = jnp.sum(x, axis=1)                                  # [TB, C], lane-major in C

    # BatchNorm1d in inference mode, folded into an affine scale/shift.
    feat = gsum * bn_scale_ref[...] + bn_shift_ref[...]        # [TB, C]
    feat_ref[...] = feat

    # m_classifier(m_fc1(feat)) with both Linears folded offline:
    #   m_score = feat @ (w1 @ w2) + (b1 @ w2 + b2)
    mscore_ref[...] = (
        jnp.dot(feat, w_ref[...], preferred_element_type=jnp.float32)
        + b_ref[...])


def fold_bn_params(bn_weight, bn_bias, bn_mean, bn_var, hw, eps=1e-5):
    """BatchNorm1d (eval) -> affine scale/shift, shaped [1, C] (lane-dense).

    The 1/HW average-pool divisor is folded into the scale so the kernel can
    use a plain spatial sum.
    """
    scale = bn_weight / jnp.sqrt(bn_var + eps)
    shift = bn_bias - bn_mean * scale
    C = bn_weight.shape[0]
    scale_hw = (scale / float(hw)).reshape(1, C).astype(jnp.float32)
    return scale_hw, shift.reshape(1, C).astype(jnp.float32)


def fold_m_head_params(w1, b1, w2, b2, lane_pad=128):
    """Folds m_fc1 (C->H) + m_classifier (H->4) into a single affine map.

    w1: [C, HIDDEN], b1: [1, HIDDEN], w2: [HIDDEN, N], b2: [1, N]
    Returns (w_eff [C, N_pad] f32, b_eff [1, N_pad] f32, N).
    Done once at parameter-setup time (not per forward call).
    Kept in f32: folded entries are ~1e-3 (w2 std=0.001) and the weight DMA
    (256 KiB) is negligible next to the activation read.
    """
    C = w1.shape[0]
    n_m = w2.shape[1]
    n_pad = ((n_m + lane_pad - 1) // lane_pad) * lane_pad
    w_eff = jnp.dot(w1, w2, preferred_element_type=jnp.float32)        # [C, N]
    b_eff = jnp.dot(b1, w2, preferred_element_type=jnp.float32) + b2   # [1, N]
    w_eff_p = jnp.zeros((C, n_pad), jnp.float32).at[:, :n_m].set(w_eff)
    b_eff_p = jnp.zeros((1, n_pad), jnp.float32).at[:, :n_m].set(b_eff)
    return w_eff_p, b_eff_p, n_m


def _pick_block_b(b_pad):
    """Batch tile for a (padded, multiple-of-8) batch.

    Prefer >= 2 grid steps so the 'parallel' batch axis shards across both
    TensorCores on v7x and the DMA pipeline overlaps compute on v5e/v6e.
    """
    for tb in (64, 32, 16, 8):
        if b_pad % tb == 0 and b_pad // tb >= 2:
            return tb
    return 8  # b_pad is always a multiple of 8


def baseline_head(base_feat_nhwc, bn_scale_hw, bn_shift, w_eff, b_eff, n_m):
    """Post-backbone forward of `Baseline` (eval, bnneck, neck_feat='after', use_m).

    base_feat_nhwc: [B, H, W, C] bfloat16 (or float32) backbone output in NHWC,
    which is the layout a TPU conv backbone natively produces.
    Returns (feat, m_score).
    """
    B, H, W, C = base_feat_nhwc.shape
    HW = H * W
    n_pad = w_eff.shape[1]

    # Free reshape (NHWC is contiguous over H*W) -- no transpose.
    x = base_feat_nhwc.reshape(B, HW, C)

    # Pad batch up to a multiple of 8 so the tiled, pipelined path is always
    # taken (outputs are sliced back below).
    b_pad = ((B + 7) // 8) * 8
    if b_pad != B:
        x = jnp.pad(x, ((0, b_pad - B), (0, 0), (0, 0)))

    tb = _pick_block_b(b_pad)
    grid = (b_pad // tb,)

    itemsize = jnp.dtype(x.dtype).itemsize
    cost = pl.CostEstimate(
        flops=2 * b_pad * C * n_pad + b_pad * HW * C,
        transcendentals=0,
        bytes_accessed=(b_pad * HW * C * itemsize      # activation read
                        + b_pad * C * 4                # feat write
                        + b_pad * n_pad * 4            # m_score write
                        + C * n_pad * 4 + 3 * C * 4))  # params

    feat, m_score_p = pl.pallas_call(
        _baseline_head_kernel,
        grid=grid,
        in_specs=[
            pl.BlockSpec((tb, HW, C), lambda i: (i, 0, 0)),   # activations: tiled over batch
            pl.BlockSpec((1, C), lambda i: (0, 0)),           # bn scale (1/HW folded in)
            pl.BlockSpec((1, C), lambda i: (0, 0)),           # bn shift
            pl.BlockSpec((C, n_pad), lambda i: (0, 0)),       # folded weight (resident, f32)
            pl.BlockSpec((1, n_pad), lambda i: (0, 0)),       # folded bias
        ],
        out_specs=[
            pl.BlockSpec((tb, C), lambda i: (i, 0)),
            pl.BlockSpec((tb, n_pad), lambda i: (i, 0)),
        ],
        out_shape=[
            jax.ShapeDtypeStruct((b_pad, C), jnp.float32),     # feat (after BN)
            jax.ShapeDtypeStruct((b_pad, n_pad), jnp.float32), # m_score (lane-padded)
        ],
        compiler_params=pltpu.CompilerParams(
            dimension_semantics=("parallel",)),
        cost_estimate=cost,
    )(x, bn_scale_hw, bn_shift, w_eff, b_eff)

    # neck_feat == 'after' -> return (feat, m_score)
    return feat[:B], m_score_p[:B, :n_m]


if __name__ == "__main__":
    # Small shapes consistent with the module (resnet18/34 -> in_planes=512).
    B, C, H, W = 2, 512, 8, 4
    HW = H * W
    HIDDEN, N_M = 1024, 4
    EPS = 1e-5

    key = jax.random.PRNGKey(0)
    k_x, k_w1, k_w2 = jax.random.split(key, 3)

    # Synthetic backbone output (stand-in for self.base(x)); TPU conv backbones
    # natively produce NHWC, and the dominant HBM read is taken in bf16.
    base_feat_nhwc = jax.random.normal(k_x, (B, H, W, C), dtype=jnp.float32)
    base_feat_bf16 = base_feat_nhwc.astype(jnp.bfloat16)

    # BatchNorm1d params/stats per weights_init_kaiming + PyTorch defaults:
    # weight=1, bias=0, running_mean=0, running_var=1.
    bn_weight = jnp.ones((C,), jnp.float32)
    bn_bias = jnp.zeros((C,), jnp.float32)
    bn_mean = jnp.zeros((C,), jnp.float32)
    bn_var = jnp.ones((C,), jnp.float32)
    bn_scale_hw, bn_shift = fold_bn_params(bn_weight, bn_bias, bn_mean, bn_var, HW, EPS)

    # m_fc1: kaiming_normal_(a=0, mode='fan_out') -> std = sqrt(2 / out_features)
    w1_torch = jax.random.normal(k_w1, (HIDDEN, C), jnp.float32) * jnp.sqrt(2.0 / HIDDEN)
    w1 = w1_torch.T                                    # [C, HIDDEN]
    b1 = jnp.zeros((1, HIDDEN), jnp.float32)

    # m_classifier: normal_(std=0.001), bias = 0
    w2_torch = jax.random.normal(k_w2, (N_M, HIDDEN), jnp.float32) * 0.001
    w2 = w2_torch.T                                    # [HIDDEN, N_M]
    b2 = jnp.zeros((1, N_M), jnp.float32)

    # One-time parameter fold (done at setup, not per forward call).
    w_eff, b_eff, n_m = fold_m_head_params(w1, b1, w2, b2)

    feat, m_score = jax.block_until_ready(
        baseline_head(base_feat_bf16, bn_scale_hw, bn_shift, w_eff, b_eff, n_m))

    # Pure-JAX reference for correctness (unfolded, f32, same bf16-rounded input).
    x_f32 = base_feat_bf16.astype(jnp.float32)
    gfeat_ref = jnp.mean(x_f32, axis=(1, 2))                       # [B, C]
    bn_scale = bn_weight / jnp.sqrt(bn_var + EPS)
    feat_ref = gfeat_ref * bn_scale + (bn_bias - bn_mean * bn_scale)
    m_score_ref = (feat_ref @ w1 + b1) @ w2 + b2

    assert feat.shape == (B, C) and m_score.shape == (B, N_M)
    assert jnp.allclose(feat, feat_ref, atol=1e-4), "feat mismatch"
    assert jnp.allclose(m_score, m_score_ref, atol=1e-4), "m_score mismatch"

    print("KERNEL_OK")
</pallas_src>

<mosaic_0001>
module attributes {stable_mosaic.version = 11 : i64} {
  func.func @_baseline_head_kernel(%arg0: i32, %arg1: memref<8x32x512xbf16, #tpu.memory_space<vmem>>, %arg2: memref<1x512xf32, #tpu.memory_space<vmem>>, %arg3: memref<1x512xf32, #tpu.memory_space<vmem>>, %arg4: memref<512x128xf32, #tpu.memory_space<vmem>>, %arg5: memref<1x128xf32, #tpu.memory_space<vmem>>, %arg6: memref<8x512xf32, #tpu.memory_space<vmem>>, %arg7: memref<8x128xf32, #tpu.memory_space<vmem>>) attributes {dimension_semantics = [#tpu.dimension_semantics<parallel>], iteration_bounds = array<i64: 1>, scalar_prefetch = 0 : i64, scratch_operands = 0 : i64, tpu.core_type = #tpu.core_type<tc>, window_params = [{transform_indices = @transform_0, window_bounds = array<i64: 8, 32, 512>}, {pipeline_mode = #tpu.pipeline_mode<synchronous>, transform_indices = @transform_1, window_bounds = array<i64: 1, 512>}, {pipeline_mode = #tpu.pipeline_mode<synchronous>, transform_indices = @transform_2, window_bounds = array<i64: 1, 512>}, {pipeline_mode = #tpu.pipeline_mode<synchronous>, transform_indices = @transform_3, window_bounds = array<i64: 512, 128>}, {pipeline_mode = #tpu.pipeline_mode<synchronous>, transform_indices = @transform_4, window_bounds = array<i64: 1, 128>}, {transform_indices = @transform_5, window_bounds = array<i64: 8, 512>}, {transform_indices = @transform_6, window_bounds = array<i64: 8, 128>}]} {
    %c0 = arith.constant 0 : index
    %c0_0 = arith.constant 0 : index
    %c0_1 = arith.constant 0 : index
    %0 = vector.load %arg1[%c0, %c0_0, %c0_1] : memref<8x32x512xbf16, #tpu.memory_space<vmem>>, vector<8x32x512xbf16>
    %1 = arith.extf %0 : vector<8x32x512xbf16> to vector<8x32x512xf32>
    %cst = arith.constant dense<0.000000e+00> : vector<8x512xf32>
    %2 = vector.multi_reduction <add>, %1, %cst [1] : vector<8x32x512xf32> to vector<8x512xf32>
    %c0_2 = arith.constant 0 : index
    %c0_3 = arith.constant 0 : index
    %3 = vector.load %arg2[%c0_2, %c0_3] : memref<1x512xf32, #tpu.memory_space<vmem>>, vector<1x512xf32>
    %4 = vector.broadcast %3 : vector<1x512xf32> to vector<8x512xf32>
    %5 = arith.mulf %2, %4 : vector<8x512xf32>
    %c0_4 = arith.constant 0 : index
    %c0_5 = arith.constant 0 : index
    %6 = vector.load %arg3[%c0_4, %c0_5] : memref<1x512xf32, #tpu.memory_space<vmem>>, vector<1x512xf32>
    %7 = vector.broadcast %6 : vector<1x512xf32> to vector<8x512xf32>
    %8 = arith.addf %5, %7 : vector<8x512xf32>
    %c0_6 = arith.constant 0 : index
    %c0_7 = arith.constant 0 : index
    %9 = vector.load %arg6[%c0_6, %c0_7] : memref<8x512xf32, #tpu.memory_space<vmem>>, vector<8x512xf32>
    tpu.vector_store %arg6[%c0_6, %c0_7], %8 {strides = array<i32>} : memref<8x512xf32, #tpu.memory_space<vmem>>, vector<8x512xf32>,
    %c0_8 = arith.constant 0 : index
    %c0_9 = arith.constant 0 : index
    %10 = vector.load %arg4[%c0_8, %c0_9] : memref<512x128xf32, #tpu.memory_space<vmem>>, vector<512x128xf32>
    %cst_10 = arith.constant dense<0.000000e+00> : vector<8x128xf32>
    %11 = tpu.matmul %8, %10, %cst_10 {dimension_numbers = #tpu.dot_dimension_numbers<[1], [0], [0], [1], [0, 0, 1, 1], [], []>} : vector<8x512xf32>, vector<512x128xf32>, vector<8x128xf32> -> vector<8x128xf32>
    %c0_11 = arith.constant 0 : index
    %c0_12 = arith.constant 0 : index
    %12 = vector.load %arg5[%c0_11, %c0_12] : memref<1x128xf32, #tpu.memory_space<vmem>>, vector<1x128xf32>
    %13 = vector.broadcast %12 : vector<1x128xf32> to vector<8x128xf32>
    %14 = arith.addf %11, %13 : vector<8x128xf32>
    %c0_13 = arith.constant 0 : index
    %c0_14 = arith.constant 0 : index
    %15 = vector.load %arg7[%c0_13, %c0_14] : memref<8x128xf32, #tpu.memory_space<vmem>>, vector<8x128xf32>
    tpu.vector_store %arg7[%c0_13, %c0_14], %14 {strides = array<i32>} : memref<8x128xf32, #tpu.memory_space<vmem>>, vector<8x128xf32>,
    return
  }
  func.func @transform_0(%arg0: i32) -> (i32, i32, i32) {
    %c0_i32 = arith.constant 0 : i32
    %c0_i32_0 = arith.constant 0 : i32
    %c0_i32_1 = arith.constant 0 : i32
    return %arg0, %c0_i32, %c0_i32_0 : i32, i32, i32
  }
  func.func @transform_1(%arg0: i32) -> (i32, i32) {
    %c0_i32 = arith.constant 0 : i32
    %c0_i32_0 = arith.constant 0 : i32
    %c0_i32_1 = arith.constant 0 : i32
    return %c0_i32, %c0_i32_0 : i32, i32
  }
  func.func @transform_2(%arg0: i32) -> (i32, i32) {
    %c0_i32 = arith.constant 0 : i32
    %c0_i32_0 = arith.constant 0 : i32
    %c0_i32_1 = arith.constant 0 : i32
    return %c0_i32, %c0_i32_0 : i32, i32
  }
  func.func @transform_3(%arg0: i32) -> (i32, i32) {
    %c0_i32 = arith.constant 0 : i32
    %c0_i32_0 = arith.constant 0 : i32
    %c0_i32_1 = arith.constant 0 : i32
    return %c0_i32, %c0_i32_0 : i32, i32
  }
  func.func @transform_4(%arg0: i32) -> (i32, i32) {
    %c0_i32 = arith.constant 0 : i32
    %c0_i32_0 = arith.constant 0 : i32
    %c0_i32_1 = arith.constant 0 : i32
    return %c0_i32, %c0_i32_0 : i32, i32
  }
  func.func @transform_5(%arg0: i32) -> (i32, i32) {
    %c0_i32 = arith.constant 0 : i32
    %c0_i32_0 = arith.constant 0 : i32
    return %arg0, %c0_i32 : i32, i32
  }
  func.func @transform_6(%arg0: i32) -> (i32, i32) {
    %c0_i32 = arith.constant 0 : i32
    %c0_i32_0 = arith.constant 0 : i32
    return %arg0, %c0_i32 : i32, i32
  }
}

</mosaic_0001>

<llo_original>
// kernel: tpu_custom_call.1
$region0: #{tpu_custom_call.1}
  #allocation0 [shape = 'u32[]', space=smem, size = 0x4, offset = 0x4, fixed_abs, tag = 'smem constant byte address 0x4 - core index']
  #allocation1 [shape = 'u32[72,128]{1,0:T(1,128)}', space=vmem, size = 0x9000, scoped, tag = 'internal scratch']
  %s0 = inlined_call_operand.hbm [shape: bf16[8,32,512], index: 0, kind: input, shape index: {}]
  %s1 = inlined_call_operand.hbm [shape: f32[1,512], index: 1, kind: input, shape index: {}]
  %s2 = inlined_call_operand.hbm [shape: f32[1,512], index: 2, kind: input, shape index: {}]
  %s3 = inlined_call_operand.hbm [shape: f32[512,128], index: 3, kind: input, shape index: {}]
  %s4 = inlined_call_operand.vmem [shape: f32[1,128], index: 4, kind: input, shape index: {}]
  %s5 = inlined_call_operand.hbm [shape: f32[8,512], index: 5, kind: output, shape index: {0}]
  %s6 = inlined_call_operand.hbm [shape: f32[8,128], index: 6, kind: output, shape index: {1}]
  %7 = xla_tuple %s5, %s6
  %s8 = sld [smem:[#allocation0]]
  $region54: #{tpu_custom_call.1} parent=0
    _
  %s10 = ssub.s32 1, %s8
  %s11 = scalar_select 0, %s10, %s8
  $region1: #{tpu_custom_call.1} parent=0
    #allocation2 [shape = 'u8[262144]{0}', space=vmem, size = 0x40000, scoped, tag = 'input window, operand 0, single buffered']
    #allocation3 [shape = 's32[1]{0}', space=sflag, size = 0x4, scoped, tag = 'scoped memory for tpu_custom_call.1']
    #allocation4 [shape = 's32[1]{0}', space=sflag, size = 0x4, scoped, tag = 'scoped memory for tpu_custom_call.1']
    #allocation5 [shape = 'u8[2048]{0}', space=vmem, size = 0x800, scoped, tag = 'input window, operand 1, single buffered']
    #allocation6 [shape = 's32[1]{0}', space=sflag, size = 0x4, scoped, tag = 'scoped memory for tpu_custom_call.1']
    #allocation7 [shape = 'u8[2048]{0}', space=vmem, size = 0x800, scoped, tag = 'input window, operand 2, single buffered']
    #allocation8 [shape = 'u8[262144]{0}', space=vmem, size = 0x40000, scoped, tag = 'input window, operand 3, single buffered']
    #allocation9 [shape = 's32[1]{0}', space=sflag, size = 0x4, scoped, tag = 'scoped memory for tpu_custom_call.1']
    #allocation10 [shape = 'u8[16384]{0}', space=vmem, size = 0x4000, scoped, tag = 'output window, operand 0, single buffered']
    #allocation11 [shape = 'u8[4096]{0}', space=vmem, size = 0x1000, scoped, tag = 'output window, operand 1, single buffered']
    #allocation12 [shape = 's32[1]{0}', space=sflag, size = 0x4, scoped, tag = 'scoped memory for tpu_custom_call.1']
    %12 = vsyncpa [#allocation3], 0
    %13 = vsyncpa [#allocation6], 0
    %14 = vsyncpa [#allocation9], 0
    %15 = vsyncpa [#allocation4], 0
    %16 = vsyncpa [#allocation12], 0
    // Predicated region
    $region2: #{tpu_custom_call.1} parent=1 // pred_check
      _
    $region3: #{tpu_custom_call.1} parent=1 // pred_check_branch
      %18 = sbr.rel (0) target = $region5
    $region4: #{tpu_custom_call.1} parent=1 // pred_region
      %20 = vsyncadd [#allocation3], 0
      %s21 = sshll.u32 %s0, 4
      %s22 = int_to_ptr.hbm [resolvable:$true] %s21
      %s23 = sshll.u32 [#allocation2], 4
      %s24 = int_to_ptr.vmem [resolvable:$true] %s23
      %29 = dma.hbm_to_vmem [thread:$0]  %s22, 8192, %s24, [#allocation3], 256, 256, 16
    $region5: #{tpu_custom_call.1} parent=1 // pred_fallthru
      _
    // Predicated region
    $region6: #{tpu_custom_call.1} parent=1 // pred_check
      _
    $region7: #{tpu_custom_call.1} parent=1 // pred_check_branch
      %31 = sbr.rel (0) target = $region9
    $region8: #{tpu_custom_call.1} parent=1 // pred_region
      %33 = vsyncadd [#allocation6], 0
      %s35 = sshll.u32 %s1, 4
      %s36 = int_to_ptr.hbm [resolvable:$true] %s35
      %s37 = sshll.u32 [#allocation5], 4
      %s38 = int_to_ptr.vmem [resolvable:$true] %s37
      %40 = dma.hbm_to_vmem [thread:$0]  %s36, 64, %s38, [#allocation6]
    $region9: #{tpu_custom_call.1} parent=1 // pred_fallthru
      _
    // Predicated region
    $region10: #{tpu_custom_call.1} parent=1 // pred_check
      _
    $region11: #{tpu_custom_call.1} parent=1 // pred_check_branch
      %42 = sbr.rel (0) target = $region13
    $region12: #{tpu_custom_call.1} parent=1 // pred_region
      %44 = vsyncadd [#allocation6], 0
      %s46 = sshll.u32 %s2, 4
      %s47 = int_to_ptr.hbm [resolvable:$true] %s46
      %s48 = sshll.u32 [#allocation7], 4
      %s49 = int_to_ptr.vmem [resolvable:$true] %s48
      %51 = dma.hbm_to_vmem [thread:$0]  %s47, 64, %s49, [#allocation6]
    $region13: #{tpu_custom_call.1} parent=1 // pred_fallthru
      _
    // Predicated region
    $region14: #{tpu_custom_call.1} parent=1 // pred_check
      _
    $region15: #{tpu_custom_call.1} parent=1 // pred_check_branch
      %53 = sbr.rel (0) target = $region17
    $region16: #{tpu_custom_call.1} parent=1 // pred_region
      %55 = vsyncadd [#allocation9], 0
      %s56 = sshll.u32 %s3, 4
      %s57 = int_to_ptr.hbm [resolvable:$true] %s56
      %s58 = sshll.u32 [#allocation8], 4
      %s59 = int_to_ptr.vmem [resolvable:$true] %s58
      %64 = dma.hbm_to_vmem [thread:$0]  %s57, 8192, %s59, [#allocation9], 128, 128, 8
    $region17: #{tpu_custom_call.1} parent=1 // pred_fallthru
      _
    // Predicated region
    $region18: #{tpu_custom_call.1} parent=1 // pred_check
      _
    $region19: #{tpu_custom_call.1} parent=1 // pred_check_branch
      %66 = sbr.rel (0) target = $region21
    $region20: #{tpu_custom_call.1} parent=1 // pred_region
      _
    $region21: #{tpu_custom_call.1} parent=1 // pred_fallthru
      _
    // Predicated region
    $region22: #{tpu_custom_call.1} parent=1 // pred_check
      _
    $region23: #{tpu_custom_call.1} parent=1 // pred_check_branch
      %68 = sbr.rel (0) target = $region25
    $region24: #{tpu_custom_call.1} parent=1 // pred_region
      %70 = dma.done [#allocation3], 8192
    $region25: #{tpu_custom_call.1} parent=1 // pred_fallthru
      _
    // Predicated region
    $region26: #{tpu_custom_call.1} parent=1 // pred_check
      _
    $region27: #{tpu_custom_call.1} parent=1 // pred_check_branch
      %72 = sbr.rel (0) target = $region29
    $region28: #{tpu_custom_call.1} parent=1 // pred_region
      %74 = dma.done [#allocation6], 64
    $region29: #{tpu_custom_call.1} parent=1 // pred_fallthru
      _
    // Predicated region
    $region30: #{tpu_custom_call.1} parent=1 // pred_check
      _
    $region31: #{tpu_custom_call.1} parent=1 // pred_check_branch
      %76 = sbr.rel (0) target = $region33
    $region32: #{tpu_custom_call.1} parent=1 // pred_region
      %78 = dma.done [#allocation6], 64
    $region33: #{tpu_custom_call.1} parent=1 // pred_fallthru
      _
    // Predicated region
    $region34: #{tpu_custom_call.1} parent=1 // pred_check
      _
    $region35: #{tpu_custom_call.1} parent=1 // pred_check_branch
      %80 = sbr.rel (0) target = $region37
    $region36: #{tpu_custom_call.1} parent=1 // pred_region
      %82 = dma.done [#allocation9], 8192
    $region37: #{tpu_custom_call.1} parent=1 // pred_fallthru
      _
    %v83 = vld [vmem:[#allocation2] sm:$0xff]
    %v84 = vld [vmem:[#allocation2 + $0x8] sm:$0xff]
    %v85 = vld [vmem:[#allocation2 + $0x10] sm:$0xff]
    %v86 = vld [vmem:[#allocation2 + $0x18] sm:$0xff]
    %v87 = vld [vmem:[#allocation2 + $0x20] sm:$0xff]
    %v88 = vld [vmem:[#allocation2 + $0x28] sm:$0xff]
    %v89 = vld [vmem:[#allocation2 + $0x30] sm:$0xff]
    %v90 = vld [vmem:[#allocation2 + $0x38] sm:$0xff]
    %v91 = vld [vmem:[#allocation2 + $0x40] sm:$0xff]
    %v92 = vld [vmem:[#allocation2 + $0x48] sm:$0xff]
    %v93 = vld [vmem:[#allocation2 + $0x50] sm:$0xff]
    %v94 = vld [vmem:[#allocation2 + $0x58] sm:$0xff]
    %v95 = vld [vmem:[#allocation2 + $0x60] sm:$0xff]
    %v96 = vld [vmem:[#allocation2 + $0x68] sm:$0xff]
    %v97 = vld [vmem:[#allocation2 + $0x70] sm:$0xff]
    %v98 = vld [vmem:[#allocation2 + $0x78] sm:$0xff]
    %v99 = vld [vmem:[#allocation2 + $0x80] sm:$0xff]
    %v100 = vld [vmem:[#allocation2 + $0x88] sm:$0xff]
    %v101 = vld [vmem:[#allocation2 + $0x90] sm:$0xff]
    %v102 = vld [vmem:[#allocation2 + $0x98] sm:$0xff]
    %v103 = vld [vmem:[#allocation2 + $0xa0] sm:$0xff]
    %v104 = vld [vmem:[#allocation2 + $0xa8] sm:$0xff]
    %v105 = vld [vmem:[#allocation2 + $0xb0] sm:$0xff]
    %v106 = vld [vmem:[#allocation2 + $0xb8] sm:$0xff]
    %v107 = vld [vmem:[#allocation2 + $0xc0] sm:$0xff]
    %v108 = vld [vmem:[#allocation2 + $0xc8] sm:$0xff]
    %v109 = vld [vmem:[#allocation2 + $0xd0] sm:$0xff]
    %v110 = vld [vmem:[#allocation2 + $0xd8] sm:$0xff]
    %v111 = vld [vmem:[#allocation2 + $0xe0] sm:$0xff]
    %v112 = vld [vmem:[#allocation2 + $0xe8] sm:$0xff]
    %v113 = vld [vmem:[#allocation2 + $0xf0] sm:$0xff]
    %v114 = vld [vmem:[#allocation2 + $0xf8] sm:$0xff]
    %v115 = vld [vmem:[#allocation2 + $0x100] sm:$0xff]
    %v116 = vld [vmem:[#allocation2 + $0x108] sm:$0xff]
    %v117 = vld [vmem:[#allocation2 + $0x110] sm:$0xff]
    %v118 = vld [vmem:[#allocation2 + $0x118] sm:$0xff]
    %v119 = vld [vmem:[#allocation2 + $0x120] sm:$0xff]
    %v120 = vld [vmem:[#allocation2 + $0x128] sm:$0xff]
    %v121 = vld [vmem:[#allocation2 + $0x130] sm:$0xff]
    %v122 = vld [vmem:[#allocation2 + $0x138] sm:$0xff]
    %v123 = vld [vmem:[#allocation2 + $0x140] sm:$0xff]
    %v124 = vld [vmem:[#allocation2 + $0x148] sm:$0xff]
    %v125 = vld [vmem:[#allocation2 + $0x150] sm:$0xff]
    %v126 = vld [vmem:[#allocation2 + $0x158] sm:$0xff]
    %v127 = vld [vmem:[#allocation2 + $0x160] sm:$0xff]
    %v128 = vld [vmem:[#allocation2 + $0x168] sm:$0xff]
    %v129 = vld [vmem:[#allocation2 + $0x170] sm:$0xff]
    %v130 = vld [vmem:[#allocation2 + $0x178] sm:$0xff]
    %v131 = vld [vmem:[#allocation2 + $0x180] sm:$0xff]
    %v132 = vld [vmem:[#allocation2 + $0x188] sm:$0xff]
    %v133 = vld [vmem:[#allocation2 + $0x190] sm:$0xff]
    %v134 = vld [vmem:[#allocation2 + $0x198] sm:$0xff]
    %v135 = vld [vmem:[#allocation2 + $0x1a0] sm:$0xff]
    %v136 = vld [vmem:[#allocation2 + $0x1a8] sm:$0xff]
    %v137 = vld [vmem:[#allocation2 + $0x1b0] sm:$0xff]
    %v138 = vld [vmem:[#allocation2 + $0x1b8] sm:$0xff]
    %v139 = vld [vmem:[#allocation2 + $0x1c0] sm:$0xff]
    %v140 = vld [vmem:[#allocation2 + $0x1c8] sm:$0xff]
    %v141 = vld [vmem:[#allocation2 + $0x1d0] sm:$0xff]
    %v142 = vld [vmem:[#allocation2 + $0x1d8] sm:$0xff]
    %v143 = vld [vmem:[#allocation2 + $0x1e0] sm:$0xff]
    %v144 = vld [vmem:[#allocation2 + $0x1e8] sm:$0xff]
    %v145 = vld [vmem:[#allocation2 + $0x1f0] sm:$0xff]
    %v146 = vld [vmem:[#allocation2 + $0x1f8] sm:$0xff]
    %v147 = vunpack.c.l.bf16 %v83
    %v148 = vunpack.c.h.bf16 %v83
    %v149 = vunpack.c.l.bf16 %v84
    %v150 = vunpack.c.h.bf16 %v84
    %v151 = vunpack.c.l.bf16 %v85
    %v152 = vunpack.c.h.bf16 %v85
    %v153 = vunpack.c.l.bf16 %v86
    %v154 = vunpack.c.h.bf16 %v86
    %v155 = vunpack.c.l.bf16 %v87
    %v156 = vunpack.c.h.bf16 %v87
    %v157 = vunpack.c.l.bf16 %v88
    %v158 = vunpack.c.h.bf16 %v88
    %v159 = vunpack.c.l.bf16 %v89
    %v160 = vunpack.c.h.bf16 %v89
    %v161 = vunpack.c.l.bf16 %v90
    %v162 = vunpack.c.h.bf16 %v90
    %v163 = vunpack.c.l.bf16 %v91
    %v164 = vunpack.c.h.bf16 %v91
    %v165 = vunpack.c.l.bf16 %v92
    %v166 = vunpack.c.h.bf16 %v92
    %v167 = vunpack.c.l.bf16 %v93
    %v168 = vunpack.c.h.bf16 %v93
    %v169 = vunpack.c.l.bf16 %v94
    %v170 = vunpack.c.h.bf16 %v94
    %v171 = vunpack.c.l.bf16 %v95
    %v172 = vunpack.c.h.bf16 %v95
    %v173 = vunpack.c.l.bf16 %v96
    %v174 = vunpack.c.h.bf16 %v96
    %v175 = vunpack.c.l.bf16 %v97
    %v176 = vunpack.c.h.bf16 %v97
    %v177 = vunpack.c.l.bf16 %v98
    %v178 = vunpack.c.h.bf16 %v98
    %v179 = vunpack.c.l.bf16 %v99
    %v180 = vunpack.c.h.bf16 %v99
    %v181 = vunpack.c.l.bf16 %v100
    %v182 = vunpack.c.h.bf16 %v100
    %v183 = vunpack.c.l.bf16 %v101
    %v184 = vunpack.c.h.bf16 %v101
    %v185 = vunpack.c.l.bf16 %v102
    %v186 = vunpack.c.h.bf16 %v102
    %v187 = vunpack.c.l.bf16 %v103
    %v188 = vunpack.c.h.bf16 %v103
    %v189 = vunpack.c.l.bf16 %v104
    %v190 = vunpack.c.h.bf16 %v104
    %v191 = vunpack.c.l.bf16 %v105
    %v192 = vunpack.c.h.bf16 %v105
    %v193 = vunpack.c.l.bf16 %v106
    %v194 = vunpack.c.h.bf16 %v106
    %v195 = vunpack.c.l.bf16 %v107
    %v196 = vunpack.c.h.bf16 %v107
    %v197 = vunpack.c.l.bf16 %v108
    %v198 = vunpack.c.h.bf16 %v108
    %v199 = vunpack.c.l.bf16 %v109
    %v200 = vunpack.c.h.bf16 %v109
    %v201 = vunpack.c.l.bf16 %v110
    %v202 = vunpack.c.h.bf16 %v110
    %v203 = vunpack.c.l.bf16 %v111
    %v204 = vunpack.c.h.bf16 %v111
    %v205 = vunpack.c.l.bf16 %v112
    %v206 = vunpack.c.h.bf16 %v112
    %v207 = vunpack.c.l.bf16 %v113
    %v208 = vunpack.c.h.bf16 %v113
    %v209 = vunpack.c.l.bf16 %v114
    %v210 = vunpack.c.h.bf16 %v114
    %v211 = vunpack.c.l.bf16 %v115
    %v212 = vunpack.c.h.bf16 %v115
    %v213 = vunpack.c.l.bf16 %v116
    %v214 = vunpack.c.h.bf16 %v116
    %v215 = vunpack.c.l.bf16 %v117
    %v216 = vunpack.c.h.bf16 %v117
    %v217 = vunpack.c.l.bf16 %v118
    %v218 = vunpack.c.h.bf16 %v118
    %v219 = vunpack.c.l.bf16 %v119
    %v220 = vunpack.c.h.bf16 %v119
    %v221 = vunpack.c.l.bf16 %v120
    %v222 = vunpack.c.h.bf16 %v120
    %v223 = vunpack.c.l.bf16 %v121
    %v224 = vunpack.c.h.bf16 %v121
    %v225 = vunpack.c.l.bf16 %v122
    %v226 = vunpack.c.h.bf16 %v122
    %v227 = vunpack.c.l.bf16 %v123
    %v228 = vunpack.c.h.bf16 %v123
    %v229 = vunpack.c.l.bf16 %v124
    %v230 = vunpack.c.h.bf16 %v124
    %v231 = vunpack.c.l.bf16 %v125
    %v232 = vunpack.c.h.bf16 %v125
    %v233 = vunpack.c.l.bf16 %v126
    %v234 = vunpack.c.h.bf16 %v126
    %v235 = vunpack.c.l.bf16 %v127
    %v236 = vunpack.c.h.bf16 %v127
    %v237 = vunpack.c.l.bf16 %v128
    %v238 = vunpack.c.h.bf16 %v128
    %v239 = vunpack.c.l.bf16 %v129
    %v240 = vunpack.c.h.bf16 %v129
    %v241 = vunpack.c.l.bf16 %v130
    %v242 = vunpack.c.h.bf16 %v130
    %v243 = vunpack.c.l.bf16 %v131
    %v244 = vunpack.c.h.bf16 %v131
    %v245 = vunpack.c.l.bf16 %v132
    %v246 = vunpack.c.h.bf16 %v132
    %v247 = vunpack.c.l.bf16 %v133
    %v248 = vunpack.c.h.bf16 %v133
    %v249 = vunpack.c.l.bf16 %v134
    %v250 = vunpack.c.h.bf16 %v134
    %v251 = vunpack.c.l.bf16 %v135
    %v252 = vunpack.c.h.bf16 %v135
    %v253 = vunpack.c.l.bf16 %v136
    %v254 = vunpack.c.h.bf16 %v136
    %v255 = vunpack.c.l.bf16 %v137
    %v256 = vunpack.c.h.bf16 %v137
    %v257 = vunpack.c.l.bf16 %v138
    %v258 = vunpack.c.h.bf16 %v138
    %v259 = vunpack.c.l.bf16 %v139
    %v260 = vunpack.c.h.bf16 %v139
    %v261 = vunpack.c.l.bf16 %v140
    %v262 = vunpack.c.h.bf16 %v140
    %v263 = vunpack.c.l.bf16 %v141
    %v264 = vunpack.c.h.bf16 %v141
    %v265 = vunpack.c.l.bf16 %v142
    %v266 = vunpack.c.h.bf16 %v142
    %v267 = vunpack.c.l.bf16 %v143
    %v268 = vunpack.c.h.bf16 %v143
    %v269 = vunpack.c.l.bf16 %v144
    %v270 = vunpack.c.h.bf16 %v144
    %v271 = vunpack.c.l.bf16 %v145
    %v272 = vunpack.c.h.bf16 %v145
    %v273 = vunpack.c.l.bf16 %v146
    %v274 = vunpack.c.h.bf16 %v146
    %v275 = vadd.f32 %v147, %v151
    %v276 = vadd.f32 %v275, %v155
    %v277 = vadd.f32 %v276, %v159
    %v278 = vrot.slane %v277, 4
    %v279 = vadd.f32 %v277, %v278
    %v280 = vrot.slane %v279, 2
    %v281 = vadd.f32 %v279, %v280
    %v282 = vrot.slane %v281, 1
    %v283 = vadd.f32 %v281, %v282
    %v284 = vadd.f32 %v148, %v152
    %v285 = vadd.f32 %v284, %v156
    %v286 = vadd.f32 %v285, %v160
    %v287 = vrot.slane %v286, 4
    %v288 = vadd.f32 %v286, %v287
    %v289 = vrot.slane %v288, 2
    %v290 = vadd.f32 %v288, %v289
    %v291 = vrot.slane %v290, 1
    %v292 = vadd.f32 %v290, %v291
    %v293 = vadd.f32 %v149, %v153
    %v294 = vadd.f32 %v293, %v157
    %v295 = vadd.f32 %v294, %v161
    %v296 = vrot.slane %v295, 4
    %v297 = vadd.f32 %v295, %v296
    %v298 = vrot.slane %v297, 2
    %v299 = vadd.f32 %v297, %v298
    %v300 = vrot.slane %v299, 1
    %v301 = vadd.f32 %v299, %v300
    %v302 = vadd.f32 %v150, %v154
    %v303 = vadd.f32 %v302, %v158
    %v304 = vadd.f32 %v303, %v162
    %v305 = vrot.slane %v304, 4
    %v306 = vadd.f32 %v304, %v305
    %v307 = vrot.slane %v306, 2
    %v308 = vadd.f32 %v306, %v307
    %v309 = vrot.slane %v308, 1
    %v310 = vadd.f32 %v308, %v309
    %v311 = vadd.f32 %v163, %v167
    %v312 = vadd.f32 %v311, %v171
    %v313 = vadd.f32 %v312, %v175
    %v314 = vrot.slane %v313, 4
    %v315 = vadd.f32 %v313, %v314
    %v316 = vrot.slane %v315, 2
    %v317 = vadd.f32 %v315, %v316
    %v318 = vrot.slane %v317, 1
    %v319 = vadd.f32 %v317, %v318
    %v320 = vadd.f32 %v164, %v168
    %v321 = vadd.f32 %v320, %v172
    %v322 = vadd.f32 %v321, %v176
    %v323 = vrot.slane %v322, 4
    %v324 = vadd.f32 %v322, %v323
    %v325 = vrot.slane %v324, 2
    %v326 = vadd.f32 %v324, %v325
    %v327 = vrot.slane %v326, 1
    %v328 = vadd.f32 %v326, %v327
    %v329 = vadd.f32 %v165, %v169
    %v330 = vadd.f32 %v329, %v173
    %v331 = vadd.f32 %v330, %v177
    %v332 = vrot.slane %v331, 4
    %v333 = vadd.f32 %v331, %v332
    %v334 = vrot.slane %v333, 2
    %v335 = vadd.f32 %v333, %v334
    %v336 = vrot.slane %v335, 1
    %v337 = vadd.f32 %v335, %v336
    %v338 = vadd.f32 %v166, %v170
    %v339 = vadd.f32 %v338, %v174
    %v340 = vadd.f32 %v339, %v178
    %v341 = vrot.slane %v340, 4
    %v342 = vadd.f32 %v340, %v341
    %v343 = vrot.slane %v342, 2
    %v344 = vadd.f32 %v342, %v343
    %v345 = vrot.slane %v344, 1
    %v346 = vadd.f32 %v344, %v345
    %v347 = vadd.f32 %v179, %v183
    %v348 = vadd.f32 %v347, %v187
    %v349 = vadd.f32 %v348, %v191
    %v350 = vrot.slane %v349, 4
    %v351 = vadd.f32 %v349, %v350
    %v352 = vrot.slane %v351, 2
    %v353 = vadd.f32 %v351, %v352
    %v354 = vrot.slane %v353, 1
    %v355 = vadd.f32 %v353, %v354
    %v356 = vadd.f32 %v180, %v184
    %v357 = vadd.f32 %v356, %v188
    %v358 = vadd.f32 %v357, %v192
    %v359 = vrot.slane %v358, 4
    %v360 = vadd.f32 %v358, %v359
    %v361 = vrot.slane %v360, 2
    %v362 = vadd.f32 %v360, %v361
    %v363 = vrot.slane %v362, 1
    %v364 = vadd.f32 %v362, %v363
    %v365 = vadd.f32 %v181, %v185
    %v366 = vadd.f32 %v365, %v189
    %v367 = vadd.f32 %v366, %v193
    %v368 = vrot.slane %v367, 4
    %v369 = vadd.f32 %v367, %v368
    %v370 = vrot.slane %v369, 2
    %v371 = vadd.f32 %v369, %v370
    %v372 = vrot.slane %v371, 1
    %v373 = vadd.f32 %v371, %v372
    %v374 = vadd.f32 %v182, %v186
    %v375 = vadd.f32 %v374, %v190
    %v376 = vadd.f32 %v375, %v194
    %v377 = vrot.slane %v376, 4
    %v378 = vadd.f32 %v376, %v377
    %v379 = vrot.slane %v378, 2
    %v380 = vadd.f32 %v378, %v379
    %v381 = vrot.slane %v380, 1
    %v382 = vadd.f32 %v380, %v381
    %v383 = vadd.f32 %v195, %v199
    %v384 = vadd.f32 %v383, %v203
    %v385 = vadd.f32 %v384, %v207
    %v386 = vrot.slane %v385, 4
    %v387 = vadd.f32 %v385, %v386
    %v388 = vrot.slane %v387, 2
    %v389 = vadd.f32 %v387, %v388
    %v390 = vrot.slane %v389, 1
    %v391 = vadd.f32 %v389, %v390
    %v392 = vadd.f32 %v196, %v200
    %v393 = vadd.f32 %v392, %v204
    %v394 = vadd.f32 %v393, %v208
    %v395 = vrot.slane %v394, 4
    %v396 = vadd.f32 %v394, %v395
    %v397 = vrot.slane %v396, 2
    %v398 = vadd.f32 %v396, %v397
    %v399 = vrot.slane %v398, 1
    %v400 = vadd.f32 %v398, %v399
    %v401 = vadd.f32 %v197, %v201
    %v402 = vadd.f32 %v401, %v205
    %v403 = vadd.f32 %v402, %v209
    %v404 = vrot.slane %v403, 4
    %v405 = vadd.f32 %v403, %v404
    %v406 = vrot.slane %v405, 2
    %v407 = vadd.f32 %v405, %v406
    %v408 = vrot.slane %v407, 1
    %v409 = vadd.f32 %v407, %v408
    %v410 = vadd.f32 %v198, %v202
    %v411 = vadd.f32 %v410, %v206
    %v412 = vadd.f32 %v411, %v210
    %v413 = vrot.slane %v412, 4
    %v414 = vadd.f32 %v412, %v413
    %v415 = vrot.slane %v414, 2
    %v416 = vadd.f32 %v414, %v415
    %v417 = vrot.slane %v416, 1
    %v418 = vadd.f32 %v416, %v417
    %v419 = vadd.f32 %v211, %v215
    %v420 = vadd.f32 %v419, %v219
    %v421 = vadd.f32 %v420, %v223
    %v422 = vrot.slane %v421, 4
    %v423 = vadd.f32 %v421, %v422
    %v424 = vrot.slane %v423, 2
    %v425 = vadd.f32 %v423, %v424
    %v426 = vrot.slane %v425, 1
    %v427 = vadd.f32 %v425, %v426
    %v428 = vadd.f32 %v212, %v216
    %v429 = vadd.f32 %v428, %v220
    %v430 = vadd.f32 %v429, %v224
    %v431 = vrot.slane %v430, 4
    %v432 = vadd.f32 %v430, %v431
    %v433 = vrot.slane %v432, 2
    %v434 = vadd.f32 %v432, %v433
    %v435 = vrot.slane %v434, 1
    %v436 = vadd.f32 %v434, %v435
    %v437 = vadd.f32 %v213, %v217
    %v438 = vadd.f32 %v437, %v221
    %v439 = vadd.f32 %v438, %v225
    %v440 = vrot.slane %v439, 4
    %v441 = vadd.f32 %v439, %v440
    %v442 = vrot.slane %v441, 2
    %v443 = vadd.f32 %v441, %v442
    %v444 = vrot.slane %v443, 1
    %v445 = vadd.f32 %v443, %v444
    %v446 = vadd.f32 %v214, %v218
    %v447 = vadd.f32 %v446, %v222
    %v448 = vadd.f32 %v447, %v226
    %v449 = vrot.slane %v448, 4
    %v450 = vadd.f32 %v448, %v449
    %v451 = vrot.slane %v450, 2
    %v452 = vadd.f32 %v450, %v451
    %v453 = vrot.slane %v452, 1
    %v454 = vadd.f32 %v452, %v453
    %v455 = vadd.f32 %v227, %v231
    %v456 = vadd.f32 %v455, %v235
    %v457 = vadd.f32 %v456, %v239
    %v458 = vrot.slane %v457, 4
    %v459 = vadd.f32 %v457, %v458
    %v460 = vrot.slane %v459, 2
    %v461 = vadd.f32 %v459, %v460
    %v462 = vrot.slane %v461, 1
    %v463 = vadd.f32 %v461, %v462
    %v464 = vadd.f32 %v228, %v232
    %v465 = vadd.f32 %v464, %v236
    %v466 = vadd.f32 %v465, %v240
    %v467 = vrot.slane %v466, 4
    %v468 = vadd.f32 %v466, %v467
    %v469 = vrot.slane %v468, 2
    %v470 = vadd.f32 %v468, %v469
    %v471 = vrot.slane %v470, 1
    %v472 = vadd.f32 %v470, %v471
    %v473 = vadd.f32 %v229, %v233
    %v474 = vadd.f32 %v473, %v237
    %v475 = vadd.f32 %v474, %v241
    %v476 = vrot.slane %v475, 4
    %v477 = vadd.f32 %v475, %v476
    %v478 = vrot.slane %v477, 2
    %v479 = vadd.f32 %v477, %v478
    %v480 = vrot.slane %v479, 1
    %v481 = vadd.f32 %v479, %v480
    %v482 = vadd.f32 %v230, %v234
    %v483 = vadd.f32 %v482, %v238
    %v484 = vadd.f32 %v483, %v242
    %v485 = vrot.slane %v484, 4
    %v486 = vadd.f32 %v484, %v485
    %v487 = vrot.slane %v486, 2
    %v488 = vadd.f32 %v486, %v487
    %v489 = vrot.slane %v488, 1
    %v490 = vadd.f32 %v488, %v489
    %v491 = vadd.f32 %v243, %v247
    %v492 = vadd.f32 %v491, %v251
    %v493 = vadd.f32 %v492, %v255
    %v494 = vrot.slane %v493, 4
    %v495 = vadd.f32 %v493, %v494
    %v496 = vrot.slane %v495, 2
    %v497 = vadd.f32 %v495, %v496
    %v498 = vrot.slane %v497, 1
    %v499 = vadd.f32 %v497, %v498
    %v500 = vadd.f32 %v244, %v248
    %v501 = vadd.f32 %v500, %v252
    %v502 = vadd.f32 %v501, %v256
    %v503 = vrot.slane %v502, 4
    %v504 = vadd.f32 %v502, %v503
    %v505 = vrot.slane %v504, 2
    %v506 = vadd.f32 %v504, %v505
    %v507 = vrot.slane %v506, 1
    %v508 = vadd.f32 %v506, %v507
    %v509 = vadd.f32 %v245, %v249
    %v510 = vadd.f32 %v509, %v253
    %v511 = vadd.f32 %v510, %v257
    %v512 = vrot.slane %v511, 4
    %v513 = vadd.f32 %v511, %v512
    %v514 = vrot.slane %v513, 2
    %v515 = vadd.f32 %v513, %v514
    %v516 = vrot.slane %v515, 1
    %v517 = vadd.f32 %v515, %v516
    %v518 = vadd.f32 %v246, %v250
    %v519 = vadd.f32 %v518, %v254
    %v520 = vadd.f32 %v519, %v258
    %v521 = vrot.slane %v520, 4
    %v522 = vadd.f32 %v520, %v521
    %v523 = vrot.slane %v522, 2
    %v524 = vadd.f32 %v522, %v523
    %v525 = vrot.slane %v524, 1
    %v526 = vadd.f32 %v524, %v525
    %v527 = vadd.f32 %v259, %v263
    %v528 = vadd.f32 %v527, %v267
    %v529 = vadd.f32 %v528, %v271
    %v530 = vrot.slane %v529, 4
    %v531 = vadd.f32 %v529, %v530
    %v532 = vrot.slane %v531, 2
    %v533 = vadd.f32 %v531, %v532
    %v534 = vrot.slane %v533, 1
    %v535 = vadd.f32 %v533, %v534
    %v536 = vadd.f32 %v260, %v264
    %v537 = vadd.f32 %v536, %v268
    %v538 = vadd.f32 %v537, %v272
    %v539 = vrot.slane %v538, 4
    %v540 = vadd.f32 %v538, %v539
    %v541 = vrot.slane %v540, 2
    %v542 = vadd.f32 %v540, %v541
    %v543 = vrot.slane %v542, 1
    %v544 = vadd.f32 %v542, %v543
    %v545 = vadd.f32 %v261, %v265
    %v546 = vadd.f32 %v545, %v269
    %v547 = vadd.f32 %v546, %v273
    %v548 = vrot.slane %v547, 4
    %v549 = vadd.f32 %v547, %v548
    %v550 = vrot.slane %v549, 2
    %v551 = vadd.f32 %v549, %v550
    %v552 = vrot.slane %v551, 1
    %v553 = vadd.f32 %v551, %v552
    %v554 = vadd.f32 %v262, %v266
    %v555 = vadd.f32 %v554, %v270
    %v556 = vadd.f32 %v555, %v274
    %v557 = vrot.slane %v556, 4
    %v558 = vadd.f32 %v556, %v557
    %v559 = vrot.slane %v558, 2
    %v560 = vadd.f32 %v558, %v559
    %v561 = vrot.slane %v560, 1
    %v562 = vadd.f32 %v560, %v561
    %v563 = vld [vmem:[#allocation5] sm:$0xf]
    %v565 = vperm.slane %v563, 0
    %v566 = vperm.slane %v563, 1
    %v567 = vperm.slane %v563, 2
    %v568 = vperm.slane %v563, 3
    %v573 = vmul.f32 %v283, %v565
    %v574 = vmul.f32 %v292, %v566
    %v575 = vmul.f32 %v301, %v567
    %v576 = vmul.f32 %v310, %v568
    %v577 = vmul.f32 %v319, %v565
    %v578 = vmul.f32 %v328, %v566
    %v579 = vmul.f32 %v337, %v567
    %v580 = vmul.f32 %v346, %v568
    %v581 = vmul.f32 %v355, %v565
    %v582 = vmul.f32 %v364, %v566
    %v583 = vmul.f32 %v373, %v567
    %v584 = vmul.f32 %v382, %v568
    %v585 = vmul.f32 %v391, %v565
    %v586 = vmul.f32 %v400, %v566
    %v587 = vmul.f32 %v409, %v567
    %v588 = vmul.f32 %v418, %v568
    %v589 = vmul.f32 %v427, %v565
    %v590 = vmul.f32 %v436, %v566
    %v591 = vmul.f32 %v445, %v567
    %v592 = vmul.f32 %v454, %v568
    %v593 = vmul.f32 %v463, %v565
    %v594 = vmul.f32 %v472, %v566
    %v595 = vmul.f32 %v481, %v567
    %v596 = vmul.f32 %v490, %v568
    %v597 = vmul.f32 %v499, %v565
    %v598 = vmul.f32 %v508, %v566
    %v599 = vmul.f32 %v517, %v567
    %v600 = vmul.f32 %v526, %v568
    %v601 = vmul.f32 %v535, %v565
    %v602 = vmul.f32 %v544, %v566
    %v603 = vmul.f32 %v553, %v567
    %v604 = vmul.f32 %v562, %v568
    %v605 = vld [vmem:[#allocation7] sm:$0xf]
    %v607 = vperm.slane %v605, 0
    %v608 = vperm.slane %v605, 1
    %v609 = vperm.slane %v605, 2
    %v610 = vperm.slane %v605, 3
    %v615 = vadd.f32 %v573, %v607
    %v616 = vadd.f32 %v574, %v608
    %v617 = vadd.f32 %v575, %v609
    %v618 = vadd.f32 %v576, %v610
    %v619 = vadd.f32 %v577, %v607
    %v620 = vadd.f32 %v578, %v608
    %v621 = vadd.f32 %v579, %v609
    %v622 = vadd.f32 %v580, %v610
    %v623 = vadd.f32 %v581, %v607
    %v624 = vadd.f32 %v582, %v608
    %v625 = vadd.f32 %v583, %v609
    %v626 = vadd.f32 %v584, %v610
    %v627 = vadd.f32 %v585, %v607
    %v628 = vadd.f32 %v586, %v608
    %v629 = vadd.f32 %v587, %v609
    %v630 = vadd.f32 %v588, %v610
    %v631 = vadd.f32 %v589, %v607
    %v632 = vadd.f32 %v590, %v608
    %v633 = vadd.f32 %v591, %v609
    %v634 = vadd.f32 %v592, %v610
    %v635 = vadd.f32 %v593, %v607
    %v636 = vadd.f32 %v594, %v608
    %v637 = vadd.f32 %v595, %v609
    %v638 = vadd.f32 %v596, %v610
    %v639 = vadd.f32 %v597, %v607
    %v640 = vadd.f32 %v598, %v608
    %v641 = vadd.f32 %v599, %v609
    %v642 = vadd.f32 %v600, %v610
    %v643 = vadd.f32 %v601, %v607
    %v644 = vadd.f32 %v602, %v608
    %v645 = vadd.f32 %v603, %v609
    %v646 = vadd.f32 %v604, %v610
    %v679 = vrot.slane %v619, 7
    %vm680 = vcmask 1041409
    %v681 = vsel %vm680, %v679, %v615
    %v682 = vrot.slane %v623, 6
    %vm683 = vcmask 1042434
    %v684 = vsel %vm683, %v682, %v681
    %v685 = vrot.slane %v627, 5
    %vm686 = vcmask 1043459
    %v687 = vsel %vm686, %v685, %v684
    %v688 = vrot.slane %v631, 4
    %vm689 = vcmask 1044484
    %v690 = vsel %vm689, %v688, %v687
    %v691 = vrot.slane %v635, 3
    %vm692 = vcmask 1045509
    %v693 = vsel %vm692, %v691, %v690
    %v694 = vrot.slane %v639, 2
    %vm695 = vcmask 1046534
    %v696 = vsel %vm695, %v694, %v693
    %v697 = vrot.slane %v643, 1
    %vm698 = vcmask 1047559
    %v699 = vsel %vm698, %v697, %v696
    %v700 = vrot.slane %v620, 7
    %v701 = vsel %vm680, %v700, %v616
    %v702 = vrot.slane %v624, 6
    %v703 = vsel %vm683, %v702, %v701
    %v704 = vrot.slane %v628, 5
    %v705 = vsel %vm686, %v704, %v703
    %v706 = vrot.slane %v632, 4
    %v707 = vsel %vm689, %v706, %v705
    %v708 = vrot.slane %v636, 3
    %v709 = vsel %vm692, %v708, %v707
    %v710 = vrot.slane %v640, 2
    %v711 = vsel %vm695, %v710, %v709
    %v712 = vrot.slane %v644, 1
    %v713 = vsel %vm698, %v712, %v711
    %v714 = vrot.slane %v621, 7
    %v715 = vsel %vm680, %v714, %v617
    %v716 = vrot.slane %v625, 6
    %v717 = vsel %vm683, %v716, %v715
    %v718 = vrot.slane %v629, 5
    %v719 = vsel %vm686, %v718, %v717
    %v720 = vrot.slane %v633, 4
    %v721 = vsel %vm689, %v720, %v719
    %v722 = vrot.slane %v637, 3
    %v723 = vsel %vm692, %v722, %v721
    %v724 = vrot.slane %v641, 2
    %v725 = vsel %vm695, %v724, %v723
    %v726 = vrot.slane %v645, 1
    %v727 = vsel %vm698, %v726, %v725
    %v728 = vrot.slane %v622, 7
    %v729 = vsel %vm680, %v728, %v618
    %v730 = vrot.slane %v626, 6
    %v731 = vsel %vm683, %v730, %v729
    %v732 = vrot.slane %v630, 5
    %v733 = vsel %vm686, %v732, %v731
    %v734 = vrot.slane %v634, 4
    %v735 = vsel %vm689, %v734, %v733
    %v736 = vrot.slane %v638, 3
    %v737 = vsel %vm692, %v736, %v735
    %v738 = vrot.slane %v642, 2
    %v739 = vsel %vm695, %v738, %v737
    %v740 = vrot.slane %v646, 1
    %v741 = vsel %vm698, %v740, %v739
    %746 = vst [vmem:[#allocation10] sm:$0xff] %v699
    %747 = vst [vmem:[#allocation10 + $0x8] sm:$0xff] %v713
    %748 = vst [vmem:[#allocation10 + $0x10] sm:$0xff] %v727
    %749 = vst [vmem:[#allocation10 + $0x18] sm:$0xff] %v741
    %v750 = vld [vmem:[#allocation8] sm:$0xff]
    %v751 = vld [vmem:[#allocation8 + $0x8] sm:$0xff]
    %v752 = vld [vmem:[#allocation8 + $0x10] sm:$0xff]
    %v753 = vld [vmem:[#allocation8 + $0x18] sm:$0xff]
    %v754 = vld [vmem:[#allocation8 + $0x20] sm:$0xff]
    %v755 = vld [vmem:[#allocation8 + $0x28] sm:$0xff]
    %v756 = vld [vmem:[#allocation8 + $0x30] sm:$0xff]
    %v757 = vld [vmem:[#allocation8 + $0x38] sm:$0xff]
    %v758 = vld [vmem:[#allocation8 + $0x40] sm:$0xff]
    %v759 = vld [vmem:[#allocation8 + $0x48] sm:$0xff]
    %v760 = vld [vmem:[#allocation8 + $0x50] sm:$0xff]
    %v761 = vld [vmem:[#allocation8 + $0x58] sm:$0xff]
    %v762 = vld [vmem:[#allocation8 + $0x60] sm:$0xff]
    %v763 = vld [vmem:[#allocation8 + $0x68] sm:$0xff]
    %v764 = vld [vmem:[#allocation8 + $0x70] sm:$0xff]
    %v765 = vld [vmem:[#allocation8 + $0x78] sm:$0xff]
    %v766 = vld [vmem:[#allocation8 + $0x80] sm:$0xff]
    %v767 = vld [vmem:[#allocation8 + $0x88] sm:$0xff]
    %v768 = vld [vmem:[#allocation8 + $0x90] sm:$0xff]
    %v769 = vld [vmem:[#allocation8 + $0x98] sm:$0xff]
    %v770 = vld [vmem:[#allocation8 + $0xa0] sm:$0xff]
    %v771 = vld [vmem:[#allocation8 + $0xa8] sm:$0xff]
    %v772 = vld [vmem:[#allocation8 + $0xb0] sm:$0xff]
    %v773 = vld [vmem:[#allocation8 + $0xb8] sm:$0xff]
    %v774 = vld [vmem:[#allocation8 + $0xc0] sm:$0xff]
    %v775 = vld [vmem:[#allocation8 + $0xc8] sm:$0xff]
    %v776 = vld [vmem:[#allocation8 + $0xd0] sm:$0xff]
    %v777 = vld [vmem:[#allocation8 + $0xd8] sm:$0xff]
    %v778 = vld [vmem:[#allocation8 + $0xe0] sm:$0xff]
    %v779 = vld [vmem:[#allocation8 + $0xe8] sm:$0xff]
    %v780 = vld [vmem:[#allocation8 + $0xf0] sm:$0xff]
    %v781 = vld [vmem:[#allocation8 + $0xf8] sm:$0xff]
    %v782 = vld [vmem:[#allocation8 + $0x100] sm:$0xff]
    %v783 = vld [vmem:[#allocation8 + $0x108] sm:$0xff]
    %v784 = vld [vmem:[#allocation8 + $0x110] sm:$0xff]
    %v785 = vld [vmem:[#allocation8 + $0x118] sm:$0xff]
    %v786 = vld [vmem:[#allocation8 + $0x120] sm:$0xff]
    %v787 = vld [vmem:[#allocation8 + $0x128] sm:$0xff]
    %v788 = vld [vmem:[#allocation8 + $0x130] sm:$0xff]
    %v789 = vld [vmem:[#allocation8 + $0x138] sm:$0xff]
    %v790 = vld [vmem:[#allocation8 + $0x140] sm:$0xff]
    %v791 = vld [vmem:[#allocation8 + $0x148] sm:$0xff]
    %v792 = vld [vmem:[#allocation8 + $0x150] sm:$0xff]
    %v793 = vld [vmem:[#allocation8 + $0x158] sm:$0xff]
    %v794 = vld [vmem:[#allocation8 + $0x160] sm:$0xff]
    %v795 = vld [vmem:[#allocation8 + $0x168] sm:$0xff]
    %v796 = vld [vmem:[#allocation8 + $0x170] sm:$0xff]
    %v797 = vld [vmem:[#allocation8 + $0x178] sm:$0xff]
    %v798 = vld [vmem:[#allocation8 + $0x180] sm:$0xff]
    %v799 = vld [vmem:[#allocation8 + $0x188] sm:$0xff]
    %v800 = vld [vmem:[#allocation8 + $0x190] sm:$0xff]
    %v801 = vld [vmem:[#allocation8 + $0x198] sm:$0xff]
    %v802 = vld [vmem:[#allocation8 + $0x1a0] sm:$0xff]
    %v803 = vld [vmem:[#allocation8 + $0x1a8] sm:$0xff]
    %v804 = vld [vmem:[#allocation8 + $0x1b0] sm:$0xff]
    %v805 = vld [vmem:[#allocation8 + $0x1b8] sm:$0xff]
    %v806 = vld [vmem:[#allocation8 + $0x1c0] sm:$0xff]
    %v807 = vld [vmem:[#allocation8 + $0x1c8] sm:$0xff]
    %v808 = vld [vmem:[#allocation8 + $0x1d0] sm:$0xff]
    %v809 = vld [vmem:[#allocation8 + $0x1d8] sm:$0xff]
    %v810 = vld [vmem:[#allocation8 + $0x1e0] sm:$0xff]
    %v811 = vld [vmem:[#allocation8 + $0x1e8] sm:$0xff]
    %v812 = vld [vmem:[#allocation8 + $0x1f0] sm:$0xff]
    %v813 = vld [vmem:[#allocation8 + $0x1f8] sm:$0xff]
    %v814 = vld [vmem:[%s4] sm:$0x1]
    %v816 = vperm.slane %v814, 0
    %818 = vmatpush.msra.mxu0 %v765
    %819 = vmatpush.msra.mxu0 %v764
    %820 = vmatpush.msra.mxu0 %v763
    %821 = vmatpush.msra.mxu0 %v762
    %822 = vmatpush.msra.mxu0 %v761
    %823 = vmatpush.msra.mxu0 %v760
    %824 = vmatpush.msra.mxu0 %v759
    %825 = vmatpush.msra.mxu0 %v758
    %826 = vmatpush.msra.mxu0 %v757
    %827 = vmatpush.msra.mxu0 %v756
    %828 = vmatpush.msra.mxu0 %v755
    %829 = vmatpush.msra.mxu0 %v754
    %830 = vmatpush.msra.mxu0 %v753
    %831 = vmatpush.msra.mxu0 %v752
    %832 = vmatpush.msra.mxu0 %v751
    %833 = vmatpush.msra.mxu0 %v750
    %834 = vmatmul.f32.gmra.mxu0 %v699
    %v835 = vpop.f32.mrf.mxu0
    %v836 = vadd.f32 %v816, %v835
    %837 = vdwg.mxu0
    %838 = vmatpush.msra.mxu0 %v781
    %839 = vmatpush.msra.mxu0 %v780
    %840 = vmatpush.msra.mxu0 %v779
    %841 = vmatpush.msra.mxu0 %v778
    %842 = vmatpush.msra.mxu0 %v777
    %843 = vmatpush.msra.mxu0 %v776
    %844 = vmatpush.msra.mxu0 %v775
    %845 = vmatpush.msra.mxu0 %v774
    %846 = vmatpush.msra.mxu0 %v773
    %847 = vmatpush.msra.mxu0 %v772
    %848 = vmatpush.msra.mxu0 %v771
    %849 = vmatpush.msra.mxu0 %v770
    %850 = vmatpush.msra.mxu0 %v769
    %851 = vmatpush.msra.mxu0 %v768
    %852 = vmatpush.msra.mxu0 %v767
    %853 = vmatpush.msra.mxu0 %v766
    %854 = vmatmul.f32.gmra.mxu0 %v713
    %v855 = vpop.f32.mrf.mxu0
    %v856 = vadd.f32 %v836, %v855
    %857 = vdwg.mxu0
    %858 = vmatpush.msra.mxu0 %v797
    %859 = vmatpush.msra.mxu0 %v796
    %860 = vmatpush.msra.mxu0 %v795
    %861 = vmatpush.msra.mxu0 %v794
    %862 = vmatpush.msra.mxu0 %v793
    %863 = vmatpush.msra.mxu0 %v792
    %864 = vmatpush.msra.mxu0 %v791
    %865 = vmatpush.msra.mxu0 %v790
    %866 = vmatpush.msra.mxu0 %v789
    %867 = vmatpush.msra.mxu0 %v788
    %868 = vmatpush.msra.mxu0 %v787
    %869 = vmatpush.msra.mxu0 %v786
    %870 = vmatpush.msra.mxu0 %v785
    %871 = vmatpush.msra.mxu0 %v784
    %872 = vmatpush.msra.mxu0 %v783
    %873 = vmatpush.msra.mxu0 %v782
    %874 = vmatmul.f32.gmra.mxu0 %v727
    %v875 = vpop.f32.mrf.mxu0
    %v876 = vadd.f32 %v856, %v875
    %877 = vdwg.mxu0
    %878 = vmatpush.msra.mxu0 %v813
    %879 = vmatpush.msra.mxu0 %v812
    %880 = vmatpush.msra.mxu0 %v811
    %881 = vmatpush.msra.mxu0 %v810
    %882 = vmatpush.msra.mxu0 %v809
    %883 = vmatpush.msra.mxu0 %v808
    %884 = vmatpush.msra.mxu0 %v807
    %885 = vmatpush.msra.mxu0 %v806
    %886 = vmatpush.msra.mxu0 %v805
    %887 = vmatpush.msra.mxu0 %v804
    %888 = vmatpush.msra.mxu0 %v803
    %889 = vmatpush.msra.mxu0 %v802
    %890 = vmatpush.msra.mxu0 %v801
    %891 = vmatpush.msra.mxu0 %v800
    %892 = vmatpush.msra.mxu0 %v799
    %893 = vmatpush.msra.mxu0 %v798
    %894 = vmatmul.f32.gmra.mxu0 %v741
    %v895 = vpop.f32.mrf.mxu0
    %v896 = vadd.f32 %v876, %v895
    %897 = vdwg.mxu0
    %898 = vst [vmem:[#allocation11] sm:$0xff] %v896
    // Predicated region
    $region38: #{tpu_custom_call.1} parent=1 // pred_check
      _
    $region39: #{tpu_custom_call.1} parent=1 // pred_check_branch
      %900 = sbr.rel (0) target = $region41
    $region40: #{tpu_custom_call.1} parent=1 // pred_region
      %902 = vsyncadd [#allocation4], 0
      %s904 = sshll.u32 [#allocation10], 4
      %s905 = int_to_ptr.vmem [resolvable:$true] %s904
      %s906 = sshll.u32 %s5, 4
      %s907 = int_to_ptr.hbm [resolvable:$true] %s906
      %909 = dma.vmem_to_hbm [thread:$0]  %s905, 512, %s907, [#allocation4]
    $region41: #{tpu_custom_call.1} parent=1 // pred_fallthru
      _
    // Predicated region
    $region42: #{tpu_custom_call.1} parent=1 // pred_check
      _
    $region43: #{tpu_custom_call.1} parent=1 // pred_check_branch
      %911 = sbr.rel (0) target = $region45
    $region44: #{tpu_custom_call.1} parent=1 // pred_region
      %913 = vsyncadd [#allocation12], 0
      %s915 = sshll.u32 [#allocation11], 4
      %s916 = int_to_ptr.vmem [resolvable:$true] %s915
      %s917 = sshll.u32 %s6, 4
      %s918 = int_to_ptr.hbm [resolvable:$true] %s917
      %920 = dma.vmem_to_hbm [thread:$0]  %s916, 128, %s918, [#allocation12]
    $region45: #{tpu_custom_call.1} parent=1 // pred_fallthru
      _
    // Predicated region
    $region46: #{tpu_custom_call.1} parent=1 // pred_check
      _
    $region47: #{tpu_custom_call.1} parent=1 // pred_check_branch
      %922 = sbr.rel (0) target = $region49
    $region48: #{tpu_custom_call.1} parent=1 // pred_region
      %924 = dma.done [#allocation4], 512
    $region49: #{tpu_custom_call.1} parent=1 // pred_fallthru
      _
    // Predicated region
    $region50: #{tpu_custom_call.1} parent=1 // pred_check
      _
    $region51: #{tpu_custom_call.1} parent=1 // pred_check_branch
      %926 = sbr.rel (0) target = $region53
    $region52: #{tpu_custom_call.1} parent=1 // pred_region
      %928 = dma.done [#allocation12], 128
    $region53: #{tpu_custom_call.1} parent=1 // pred_fallthru
      _
    %929 = vsyncpa [#allocation3], 1
    %930 = vsyncpa [#allocation6], 1
    %931 = vsyncpa [#allocation9], 1
    %932 = vsyncpa [#allocation4], 1
    %933 = vsyncpa [#allocation12], 1

</llo_original>
